<compile_context>
chip_gen: v7x
topology: tpu7x:2x2x1
jax: 0.10.0
libtpu: 0.0.40
codegen_flags: <defaults>
</compile_context>

<pallas_src>
import functools

import jax
import jax.numpy as jnp
from jax.experimental import pallas as pl
from jax.experimental.pallas import tpu as pltpu


def _round_up(a: int, m: int) -> int:
    return ((a + m - 1) // m) * m


def _cdiv(a: int, b: int) -> int:
    return -(-a // b)


def _vmem_budget_bytes() -> int:
    """VMEM the kernel may use: chip capacity minus headroom (v7x-safe)."""
    cap = 0
    try:
        info = pltpu.get_tpu_info()
        cap = int(getattr(info, "vmem_capacity_bytes", 0) or 0)
    except Exception:
        cap = 0
    if cap <= 0:
        cap = 64 << 20  # v7x per-TensorCore capacity: safe lower bound everywhere
    budget = cap - max(cap // 8, 8 << 20)  # ~56 MiB on v7x, ~112 MiB on v5e/v6e
    return max(budget, 24 << 20)


def _tile_vmem_bytes(tm: int, tv: int, H: int, itemsize: int) -> int:
    # Conservative: double-buffered x and w tiles, 3x (tm,tv) f32 for the
    # logits tile + softmax temporaries, small labels/loss/per-row scratch.
    return (2 * tm * H * itemsize
            + 2 * tv * H * itemsize
            + 3 * tm * tv * 4
            + 16 * tm * 4)


def _select_tiles(H: int, itemsize: int, budget: int):
    # Weight-HBM arithmetic intensity scales with tm (the weight is re-streamed
    # once per token tile), so maximize tm first; tv only keeps the MXU fed.
    for tm in (1024, 512, 256, 128, 64, 32, 16, 8):
        for tv in (1024, 512, 256, 128):
            if _tile_vmem_bytes(tm, tv, H, itemsize) <= budget:
                return tm, tv
    # TODO(synk): add an H-chunk (contraction) grid axis for hidden sizes so
    # large that even (8, H) + (128, H) tiles exceed the VMEM budget.
    return 8, 128


def _fused_lce_kernel(x_ref, w_ref, y_ref, loss_ref,
                      m_sc, s_sc, t_sc, *,
                      ignore_index, vocab_size, tv, needs_vocab_mask):
    """Grid = (token_tiles, vocab_tiles); vocab axis is the (inner) reduction."""
    kv = pl.program_id(1)

    @pl.when(kv == 0)
    def _():
        m_sc[...] = jnp.full_like(m_sc, -jnp.inf)
        s_sc[...] = jnp.zeros_like(s_sc)
        t_sc[...] = jnp.zeros_like(t_sc)

    # (tm, H) x (tv, H) contracted over H -> (tm, tv) logits tile; the weight
    # stays in its natural (V, H) layout (no transpose), bf16 (or f32) inputs,
    # f32 MXU accumulation.
    logits = jax.lax.dot_general(
        x_ref[...], w_ref[...],
        dimension_numbers=(((1,), (1,)), ((), ())),
        preferred_element_type=jnp.float32)

    local_col = jax.lax.broadcasted_iota(jnp.int32, logits.shape, 1)

    if needs_vocab_mask:  # static: only when V % tv != 0 (ragged last tile)
        limit = jnp.minimum(vocab_size - kv * tv, tv)   # scalar per step
        logits = jnp.where(local_col < limit, logits, -1e30)

    # Target-logit gather via a *local* one-hot: at most one vocab tile can
    # contain each row's target, and ignore_index (-100) never matches.
    y_local = y_ref[...] - kv * tv                       # (tm, 1) int32
    onehot = local_col == y_local
    t_sc[...] += jnp.sum(jnp.where(onehot, logits, 0.0), axis=-1, keepdims=True)

    # Online logsumexp over the vocab axis.
    m_prev = m_sc[...]
    m_new = jnp.maximum(m_prev, jnp.max(logits, axis=-1, keepdims=True))
    s_sc[...] = (s_sc[...] * jnp.exp(m_prev - m_new)
                 + jnp.sum(jnp.exp(logits - m_new), axis=-1, keepdims=True))
    m_sc[...] = m_new

    @pl.when(kv == pl.num_programs(1) - 1)
    def _():
        lse = m_sc[...] + jnp.log(s_sc[...])
        valid = y_ref[...] != ignore_index
        loss_ref[...] = jnp.where(valid, lse - t_sc[...], 0.0)


def fused_linear_cross_entropy(x, w, y, *, ignore_index=-100,
                               compute_dtype=jnp.bfloat16):
    """Equivalent of TorchLMHeadCE.forward(x, y) (reduction='mean')."""
    N, H = x.shape
    V, H2 = w.shape
    assert H == H2

    itemsize = jnp.dtype(compute_dtype).itemsize
    budget = _vmem_budget_bytes()
    tm_sel, tv_sel = _select_tiles(H, itemsize, budget)

    # Clamp tiles to the (aligned) problem size.
    tm_eff = min(tm_sel, _round_up(N, 8))
    tv_eff = min(tv_sel, _round_up(V, 128))
    # Keep >= 2 token tiles so both TensorCores of a v7x chip get work.
    if N > 8 and _cdiv(N, tm_eff) < 2:
        tm_eff = max(8, _round_up(_cdiv(N, 2), 8))
    assert tm_eff % 8 == 0 and tv_eff % 128 == 0

    N_pad = _round_up(N, tm_eff)
    grid_m = N_pad // tm_eff
    grid_v = _cdiv(V, tv_eff)               # ragged last vocab tile -> in-kernel mask
    needs_vocab_mask = (V % tv_eff) != 0

    # No wrapper-side copy/pad of the (large) weight: cast only if needed.
    x_c = x.astype(compute_dtype) if x.dtype != compute_dtype else x
    w_c = w.astype(compute_dtype) if w.dtype != compute_dtype else w
    if N_pad != N:
        x_c = jnp.pad(x_c, ((0, N_pad - N), (0, 0)))
    y2 = jnp.full((N_pad, 1), ignore_index, dtype=jnp.int32)
    y2 = y2.at[:N, 0].set(y.astype(jnp.int32))

    kernel = functools.partial(
        _fused_lce_kernel,
        ignore_index=ignore_index,
        vocab_size=V,
        tv=tv_eff,
        needs_vocab_mask=needs_vocab_mask,
    )

    vmem_limit = int(budget)
    v_cols = grid_v * tv_eff
    cost = pl.CostEstimate(
        flops=2 * N_pad * v_cols * H,
        transcendentals=N_pad * v_cols,                 # exp in online softmax
        bytes_accessed=(grid_m * V * H * itemsize       # weight re-streamed per token tile
                        + N_pad * H * itemsize          # activations
                        + N_pad * 2 * 4),               # labels + per-token loss
    )

    def make_call(use_buffer_hints: bool):
        def spec(shape, index_map, bufs=None):
            if use_buffer_hints and bufs is not None:
                return pl.BlockSpec(shape, index_map,
                                    pipeline_mode=pl.Buffered(bufs))
            return pl.BlockSpec(shape, index_map)

        return pl.pallas_call(
            kernel,
            out_shape=jax.ShapeDtypeStruct((N_pad, 1), jnp.float32),
            grid_spec=pltpu.PrefetchScalarGridSpec(
                num_scalar_prefetch=0,
                grid=(grid_m, grid_v),
                in_specs=[
                    # x / labels only change with the outer token axis ->
                    # single buffer frees VMEM for a larger tm.
                    spec((tm_eff, H), lambda i, k: (i, 0), 1),   # x tile
                    spec((tv_eff, H), lambda i, k: (k, 0)),      # weight tile (double-buffered)
                    spec((tm_eff, 1), lambda i, k: (i, 0), 1),   # labels tile
                ],
                out_specs=pl.BlockSpec((tm_eff, 1), lambda i, k: (i, 0)),
                scratch_shapes=[pltpu.VMEM((tm_eff, 1), jnp.float32)] * 3,
            ),
            compiler_params=pltpu.CompilerParams(
                dimension_semantics=("parallel", "arbitrary"),
                vmem_limit_bytes=vmem_limit,
            ),
            cost_estimate=cost,
        )

    try:
        per_token = make_call(True)(x_c, w_c, y2)
    except Exception:
        # Pallas version without BlockSpec pipeline_mode / pl.Buffered support.
        per_token = make_call(False)(x_c, w_c, y2)

    # reduction='mean' over non-ignored targets (padded rows contribute 0).
    # NOTE: if every label is ignore_index this is 0/0 = NaN, matching torch.
    valid = (y != ignore_index)
    n_valid = jnp.sum(valid).astype(jnp.float32)
    return jnp.sum(per_token[:N, 0]) / n_valid


def _reference(x, w, y, ignore_index=-100):
    """Pure-JAX reference mirroring torch semantics (f32 matmul)."""
    logits = (x @ w.T).astype(jnp.float32)
    lse = jax.nn.logsumexp(logits, axis=-1)
    y_safe = jnp.where(y == ignore_index, 0, y)
    tgt = jnp.take_along_axis(logits, y_safe[:, None], axis=-1)[:, 0]
    valid = (y != ignore_index)
    per = jnp.where(valid, lse - tgt, 0.0)
    return jnp.sum(per) / jnp.sum(valid).astype(jnp.float32)


if __name__ == "__main__":
    # Small shapes consistent with the module: B=2, T=8 -> N=16 tokens,
    # hidden H=32, vocab V=256.
    B, T, H, V = 2, 8, 32, 256
    N = B * T
    ignore_index = -100

    key = jax.random.PRNGKey(0)
    kx, kw, ky = jax.random.split(key, 3)

    # torch.nn.Linear default init: U(-1/sqrt(H), 1/sqrt(H))
    bound = 1.0 / (H ** 0.5)
    w = jax.random.uniform(kw, (V, H), jnp.float32, minval=-bound, maxval=bound)
    x = jax.random.normal(kx, (N, H), jnp.float32)
    y = jax.random.randint(ky, (N,), 0, V, dtype=jnp.int32)
    # Mark a couple of tokens as ignored to exercise ignore_index handling.
    y = y.at[3].set(ignore_index).at[10].set(ignore_index)

    loss = jax.block_until_ready(fused_linear_cross_entropy(
        x, w, y, ignore_index=ignore_index))
    ref = jax.block_until_ready(_reference(x, w, y, ignore_index=ignore_index))

    # Tolerance accounts for bf16 matmul inputs (accumulation / softmax stay
    # f32); pass compute_dtype=jnp.float32 for bit-closeness to torch.
    assert jnp.allclose(loss, ref, rtol=1e-2, atol=1e-2), (loss, ref)
    print("KERNEL_OK")
</pallas_src>

<mosaic_0001>
module attributes {stable_mosaic.version = 11 : i64} {
  func.func @_fused_lce_kernel(%arg0: i32, %arg1: i32, %arg2: memref<8x32xbf16, #tpu.memory_space<vmem>>, %arg3: memref<256x32xbf16, #tpu.memory_space<vmem>>, %arg4: memref<8x1xi32, #tpu.memory_space<vmem>>, %arg5: memref<8x1xf32, #tpu.memory_space<vmem>>, %arg6: memref<8x1xf32, #tpu.memory_space<vmem>>, %arg7: memref<8x1xf32, #tpu.memory_space<vmem>>, %arg8: memref<8x1xf32, #tpu.memory_space<vmem>>) attributes {dimension_semantics = [#tpu.dimension_semantics<parallel>, #tpu.dimension_semantics<arbitrary>], iteration_bounds = array<i64: 2, 1>, scalar_prefetch = 0 : i64, scratch_operands = 3 : i64, tpu.core_type = #tpu.core_type<tc>, window_params = [{pipeline_mode = #tpu.pipeline_mode<synchronous>, transform_indices = @transform_0, window_bounds = array<i64: 8, 32>}, {transform_indices = @transform_1, window_bounds = array<i64: 256, 32>}, {pipeline_mode = #tpu.pipeline_mode<synchronous>, transform_indices = @transform_2, window_bounds = array<i64: 8, 1>}, {transform_indices = @transform_3, window_bounds = array<i64: 8, 1>}]} {
    %c0_i32 = arith.constant 0 : i32
    %0 = arith.cmpi eq, %arg1, %c0_i32 : i32
    %1 = arith.extui %0 : i1 to i32
    %c0_i32_0 = arith.constant 0 : i32
    %2 = arith.cmpi ne, %1, %c0_i32_0 : i32
    scf.if %2 {
      %cst_24 = arith.constant 0xFF800000 : f32
      %39 = vector.broadcast %cst_24 : f32 to vector<8x1xf32>
      %c0_25 = arith.constant 0 : index
      %c0_26 = arith.constant 0 : index
      %40 = vector.load %arg6[%c0_25, %c0_26] : memref<8x1xf32, #tpu.memory_space<vmem>>, vector<8x1xf32>
      tpu.vector_store %arg6[%c0_25, %c0_26], %39 {strides = array<i32>} : memref<8x1xf32, #tpu.memory_space<vmem>>, vector<8x1xf32>,
      %cst_27 = arith.constant 0.000000e+00 : f32
      %41 = vector.broadcast %cst_27 : f32 to vector<8x1xf32>
      %c0_28 = arith.constant 0 : index
      %c0_29 = arith.constant 0 : index
      %42 = vector.load %arg7[%c0_28, %c0_29] : memref<8x1xf32, #tpu.memory_space<vmem>>, vector<8x1xf32>
      tpu.vector_store %arg7[%c0_28, %c0_29], %41 {strides = array<i32>} : memref<8x1xf32, #tpu.memory_space<vmem>>, vector<8x1xf32>,
      %cst_30 = arith.constant 0.000000e+00 : f32
      %43 = vector.broadcast %cst_30 : f32 to vector<8x1xf32>
      %c0_31 = arith.constant 0 : index
      %c0_32 = arith.constant 0 : index
      %44 = vector.load %arg8[%c0_31, %c0_32] : memref<8x1xf32, #tpu.memory_space<vmem>>, vector<8x1xf32>
      tpu.vector_store %arg8[%c0_31, %c0_32], %43 {strides = array<i32>} : memref<8x1xf32, #tpu.memory_space<vmem>>, vector<8x1xf32>,
    } else {
    }
    %c0 = arith.constant 0 : index
    %c0_1 = arith.constant 0 : index
    %3 = vector.load %arg2[%c0, %c0_1] : memref<8x32xbf16, #tpu.memory_space<vmem>>, vector<8x32xbf16>
    %c0_2 = arith.constant 0 : index
    %c0_3 = arith.constant 0 : index
    %4 = vector.load %arg3[%c0_2, %c0_3] : memref<256x32xbf16, #tpu.memory_space<vmem>>, vector<256x32xbf16>
    %cst = arith.constant dense<0.000000e+00> : vector<8x256xf32>
    %5 = tpu.matmul %3, %4, %cst {dimension_numbers = #tpu.dot_dimension_numbers<[1], [1], [0], [0], [0, 0, 1, 0], [], []>} : vector<8x32xbf16>, vector<256x32xbf16>, vector<8x256xf32> -> vector<8x256xf32>
    %6 = tpu.iota {dimensions = array<i32: 1>} : vector<8x256xi32>
    %c0_4 = arith.constant 0 : index
    %c0_5 = arith.constant 0 : index
    %7 = vector.load %arg4[%c0_4, %c0_5] : memref<8x1xi32, #tpu.memory_space<vmem>>, vector<8x1xi32>
    %c256_i32 = arith.constant 256 : i32
    %8 = arith.muli %arg1, %c256_i32 : i32
    %9 = vector.broadcast %8 : i32 to vector<8x1xi32>
    %10 = arith.subi %7, %9 : vector<8x1xi32>
    %11 = vector.broadcast %10 : vector<8x1xi32> to vector<8x256xi32>
    %12 = arith.cmpi eq, %6, %11 : vector<8x256xi32>
    %c0_6 = arith.constant 0 : index
    %c0_7 = arith.constant 0 : index
    %13 = vector.load %arg8[%c0_6, %c0_7] : memref<8x1xf32, #tpu.memory_space<vmem>>, vector<8x1xf32>
    %cst_8 = arith.constant 0.000000e+00 : f32
    %14 = vector.broadcast %cst_8 : f32 to vector<8x256xf32>
    %15 = arith.select %12, %5, %14 : vector<8x256xi1>, vector<8x256xf32>
    %cst_9 = arith.constant dense<0.000000e+00> : vector<8xf32>
    %16 = vector.multi_reduction <add>, %15, %cst_9 [1] : vector<8x256xf32> to vector<8xf32>
    %17 = vector.shape_cast %16 : vector<8xf32> to vector<8x1xf32>
    %18 = arith.addf %13, %17 : vector<8x1xf32>
    %c0_10 = arith.constant 0 : index
    %c0_11 = arith.constant 0 : index
    %19 = vector.load %arg8[%c0_10, %c0_11] : memref<8x1xf32, #tpu.memory_space<vmem>>, vector<8x1xf32>
    tpu.vector_store %arg8[%c0_10, %c0_11], %18 {strides = array<i32>} : memref<8x1xf32, #tpu.memory_space<vmem>>, vector<8x1xf32>,
    %c0_12 = arith.constant 0 : index
    %c0_13 = arith.constant 0 : index
    %20 = vector.load %arg6[%c0_12, %c0_13] : memref<8x1xf32, #tpu.memory_space<vmem>>, vector<8x1xf32>
    %cst_14 = arith.constant dense<0xFF800000> : vector<8xf32>
    %21 = vector.multi_reduction <maximumf>, %5, %cst_14 [1] : vector<8x256xf32> to vector<8xf32>
    %22 = vector.shape_cast %21 : vector<8xf32> to vector<8x1xf32>
    %23 = arith.maximumf %20, %22 : vector<8x1xf32>
    %c0_15 = arith.constant 0 : index
    %c0_16 = arith.constant 0 : index
    %24 = vector.load %arg7[%c0_15, %c0_16] : memref<8x1xf32, #tpu.memory_space<vmem>>, vector<8x1xf32>
    %25 = arith.subf %20, %23 : vector<8x1xf32>
    %26 = math.exp %25 : vector<8x1xf32>
    %27 = arith.mulf %24, %26 : vector<8x1xf32>
    %28 = vector.broadcast %23 : vector<8x1xf32> to vector<8x256xf32>
    %29 = arith.subf %5, %28 : vector<8x256xf32>
    %30 = math.exp %29 : vector<8x256xf32>
    %cst_17 = arith.constant dense<0.000000e+00> : vector<8xf32>
    %31 = vector.multi_reduction <add>, %30, %cst_17 [1] : vector<8x256xf32> to vector<8xf32>
    %32 = vector.shape_cast %31 : vector<8xf32> to vector<8x1xf32>
    %33 = arith.addf %27, %32 : vector<8x1xf32>
    %c0_18 = arith.constant 0 : index
    %c0_19 = arith.constant 0 : index
    %34 = vector.load %arg7[%c0_18, %c0_19] : memref<8x1xf32, #tpu.memory_space<vmem>>, vector<8x1xf32>
    tpu.vector_store %arg7[%c0_18, %c0_19], %33 {strides = array<i32>} : memref<8x1xf32, #tpu.memory_space<vmem>>, vector<8x1xf32>,
    %c0_20 = arith.constant 0 : index
    %c0_21 = arith.constant 0 : index
    %35 = vector.load %arg6[%c0_20, %c0_21] : memref<8x1xf32, #tpu.memory_space<vmem>>, vector<8x1xf32>
    tpu.vector_store %arg6[%c0_20, %c0_21], %23 {strides = array<i32>} : memref<8x1xf32, #tpu.memory_space<vmem>>, vector<8x1xf32>,
    %c0_i32_22 = arith.constant 0 : i32
    %36 = arith.cmpi eq, %arg1, %c0_i32_22 : i32
    %37 = arith.extui %36 : i1 to i32
    %c0_i32_23 = arith.constant 0 : i32
    %38 = arith.cmpi ne, %37, %c0_i32_23 : i32
    scf.if %38 {
      %c0_24 = arith.constant 0 : index
      %c0_25 = arith.constant 0 : index
      %39 = vector.load %arg6[%c0_24, %c0_25] : memref<8x1xf32, #tpu.memory_space<vmem>>, vector<8x1xf32>
      %c0_26 = arith.constant 0 : index
      %c0_27 = arith.constant 0 : index
      %40 = vector.load %arg7[%c0_26, %c0_27] : memref<8x1xf32, #tpu.memory_space<vmem>>, vector<8x1xf32>
      %41 = math.log %40 : vector<8x1xf32>
      %42 = arith.addf %39, %41 : vector<8x1xf32>
      %c0_28 = arith.constant 0 : index
      %c0_29 = arith.constant 0 : index
      %43 = vector.load %arg4[%c0_28, %c0_29] : memref<8x1xi32, #tpu.memory_space<vmem>>, vector<8x1xi32>
      %c-100_i32 = arith.constant -100 : i32
      %44 = vector.broadcast %c-100_i32 : i32 to vector<8x1xi32>
      %45 = arith.cmpi ne, %43, %44 : vector<8x1xi32>
      %c0_30 = arith.constant 0 : index
      %c0_31 = arith.constant 0 : index
      %46 = vector.load %arg8[%c0_30, %c0_31] : memref<8x1xf32, #tpu.memory_space<vmem>>, vector<8x1xf32>
      %47 = arith.subf %42, %46 : vector<8x1xf32>
      %cst_32 = arith.constant 0.000000e+00 : f32
      %48 = vector.broadcast %cst_32 : f32 to vector<8x1xf32>
      %49 = arith.select %45, %47, %48 : vector<8x1xi1>, vector<8x1xf32>
      %c0_33 = arith.constant 0 : index
      %c0_34 = arith.constant 0 : index
      %50 = vector.load %arg5[%c0_33, %c0_34] : memref<8x1xf32, #tpu.memory_space<vmem>>, vector<8x1xf32>
      tpu.vector_store %arg5[%c0_33, %c0_34], %49 {strides = array<i32>} : memref<8x1xf32, #tpu.memory_space<vmem>>, vector<8x1xf32>,
    } else {
    }
    return
  }
  func.func @transform_0(%arg0: i32, %arg1: i32) -> (i32, i32) {
    %c0_i32 = arith.constant 0 : i32
    %c0_i32_0 = arith.constant 0 : i32
    return %arg0, %c0_i32 : i32, i32
  }
  func.func @transform_1(%arg0: i32, %arg1: i32) -> (i32, i32) {
    %c0_i32 = arith.constant 0 : i32
    %c0_i32_0 = arith.constant 0 : i32
    return %arg1, %c0_i32 : i32, i32
  }
  func.func @transform_2(%arg0: i32, %arg1: i32) -> (i32, i32) {
    %c0_i32 = arith.constant 0 : i32
    %c0_i32_0 = arith.constant 0 : i32
    return %arg0, %c0_i32 : i32, i32
  }
  func.func @transform_3(%arg0: i32, %arg1: i32) -> (i32, i32) {
    %c0_i32 = arith.constant 0 : i32
    %c0_i32_0 = arith.constant 0 : i32
    return %arg0, %c0_i32 : i32, i32
  }
}

module attributes {stable_mosaic.version = 11 : i64} {
  func.func @_fused_lce_kernel(%arg0: i32, %arg1: i32, %arg2: memref<8x32xbf16, #tpu.memory_space<vmem>>, %arg3: memref<256x32xbf16, #tpu.memory_space<vmem>>, %arg4: memref<8x1xi32, #tpu.memory_space<vmem>>, %arg5: memref<8x1xf32, #tpu.memory_space<vmem>>, %arg6: memref<8x1xf32, #tpu.memory_space<vmem>>, %arg7: memref<8x1xf32, #tpu.memory_space<vmem>>, %arg8: memref<8x1xf32, #tpu.memory_space<vmem>>) attributes {dimension_semantics = [#tpu.dimension_semantics<parallel>, #tpu.dimension_semantics<arbitrary>], iteration_bounds = array<i64: 2, 1>, scalar_prefetch = 0 : i64, scratch_operands = 3 : i64, tpu.core_type = #tpu.core_type<tc>, window_params = [{transform_indices = @transform_0, window_bounds = array<i64: 8, 32>}, {transform_indices = @transform_1, window_bounds = array<i64: 256, 32>}, {transform_indices = @transform_2, window_bounds = array<i64: 8, 1>}, {transform_indices = @transform_3, window_bounds = array<i64: 8, 1>}]} {
    %c0_i32 = arith.constant 0 : i32
    %0 = arith.cmpi eq, %arg1, %c0_i32 : i32
    %1 = arith.extui %0 : i1 to i32
    %c0_i32_0 = arith.constant 0 : i32
    %2 = arith.cmpi ne, %1, %c0_i32_0 : i32
    scf.if %2 {
      %cst_24 = arith.constant 0xFF800000 : f32
      %39 = vector.broadcast %cst_24 : f32 to vector<8x1xf32>
      %c0_25 = arith.constant 0 : index
      %c0_26 = arith.constant 0 : index
      %40 = vector.load %arg6[%c0_25, %c0_26] : memref<8x1xf32, #tpu.memory_space<vmem>>, vector<8x1xf32>
      tpu.vector_store %arg6[%c0_25, %c0_26], %39 {strides = array<i32>} : memref<8x1xf32, #tpu.memory_space<vmem>>, vector<8x1xf32>,
      %cst_27 = arith.constant 0.000000e+00 : f32
      %41 = vector.broadcast %cst_27 : f32 to vector<8x1xf32>
      %c0_28 = arith.constant 0 : index
      %c0_29 = arith.constant 0 : index
      %42 = vector.load %arg7[%c0_28, %c0_29] : memref<8x1xf32, #tpu.memory_space<vmem>>, vector<8x1xf32>
      tpu.vector_store %arg7[%c0_28, %c0_29], %41 {strides = array<i32>} : memref<8x1xf32, #tpu.memory_space<vmem>>, vector<8x1xf32>,
      %cst_30 = arith.constant 0.000000e+00 : f32
      %43 = vector.broadcast %cst_30 : f32 to vector<8x1xf32>
      %c0_31 = arith.constant 0 : index
      %c0_32 = arith.constant 0 : index
      %44 = vector.load %arg8[%c0_31, %c0_32] : memref<8x1xf32, #tpu.memory_space<vmem>>, vector<8x1xf32>
      tpu.vector_store %arg8[%c0_31, %c0_32], %43 {strides = array<i32>} : memref<8x1xf32, #tpu.memory_space<vmem>>, vector<8x1xf32>,
    } else {
    }
    %c0 = arith.constant 0 : index
    %c0_1 = arith.constant 0 : index
    %3 = vector.load %arg2[%c0, %c0_1] : memref<8x32xbf16, #tpu.memory_space<vmem>>, vector<8x32xbf16>
    %c0_2 = arith.constant 0 : index
    %c0_3 = arith.constant 0 : index
    %4 = vector.load %arg3[%c0_2, %c0_3] : memref<256x32xbf16, #tpu.memory_space<vmem>>, vector<256x32xbf16>
    %cst = arith.constant dense<0.000000e+00> : vector<8x256xf32>
    %5 = tpu.matmul %3, %4, %cst {dimension_numbers = #tpu.dot_dimension_numbers<[1], [1], [0], [0], [0, 0, 1, 0], [], []>} : vector<8x32xbf16>, vector<256x32xbf16>, vector<8x256xf32> -> vector<8x256xf32>
    %6 = tpu.iota {dimensions = array<i32: 1>} : vector<8x256xi32>
    %c0_4 = arith.constant 0 : index
    %c0_5 = arith.constant 0 : index
    %7 = vector.load %arg4[%c0_4, %c0_5] : memref<8x1xi32, #tpu.memory_space<vmem>>, vector<8x1xi32>
    %c256_i32 = arith.constant 256 : i32
    %8 = arith.muli %arg1, %c256_i32 : i32
    %9 = vector.broadcast %8 : i32 to vector<8x1xi32>
    %10 = arith.subi %7, %9 : vector<8x1xi32>
    %11 = vector.broadcast %10 : vector<8x1xi32> to vector<8x256xi32>
    %12 = arith.cmpi eq, %6, %11 : vector<8x256xi32>
    %c0_6 = arith.constant 0 : index
    %c0_7 = arith.constant 0 : index
    %13 = vector.load %arg8[%c0_6, %c0_7] : memref<8x1xf32, #tpu.memory_space<vmem>>, vector<8x1xf32>
    %cst_8 = arith.constant 0.000000e+00 : f32
    %14 = vector.broadcast %cst_8 : f32 to vector<8x256xf32>
    %15 = arith.select %12, %5, %14 : vector<8x256xi1>, vector<8x256xf32>
    %cst_9 = arith.constant dense<0.000000e+00> : vector<8xf32>
    %16 = vector.multi_reduction <add>, %15, %cst_9 [1] : vector<8x256xf32> to vector<8xf32>
    %17 = vector.shape_cast %16 : vector<8xf32> to vector<8x1xf32>
    %18 = arith.addf %13, %17 : vector<8x1xf32>
    %c0_10 = arith.constant 0 : index
    %c0_11 = arith.constant 0 : index
    %19 = vector.load %arg8[%c0_10, %c0_11] : memref<8x1xf32, #tpu.memory_space<vmem>>, vector<8x1xf32>
    tpu.vector_store %arg8[%c0_10, %c0_11], %18 {strides = array<i32>} : memref<8x1xf32, #tpu.memory_space<vmem>>, vector<8x1xf32>,
    %c0_12 = arith.constant 0 : index
    %c0_13 = arith.constant 0 : index
    %20 = vector.load %arg6[%c0_12, %c0_13] : memref<8x1xf32, #tpu.memory_space<vmem>>, vector<8x1xf32>
    %cst_14 = arith.constant dense<0xFF800000> : vector<8xf32>
    %21 = vector.multi_reduction <maximumf>, %5, %cst_14 [1] : vector<8x256xf32> to vector<8xf32>
    %22 = vector.shape_cast %21 : vector<8xf32> to vector<8x1xf32>
    %23 = arith.maximumf %20, %22 : vector<8x1xf32>
    %c0_15 = arith.constant 0 : index
    %c0_16 = arith.constant 0 : index
    %24 = vector.load %arg7[%c0_15, %c0_16] : memref<8x1xf32, #tpu.memory_space<vmem>>, vector<8x1xf32>
    %25 = arith.subf %20, %23 : vector<8x1xf32>
    %26 = math.exp %25 : vector<8x1xf32>
    %27 = arith.mulf %24, %26 : vector<8x1xf32>
    %28 = vector.broadcast %23 : vector<8x1xf32> to vector<8x256xf32>
    %29 = arith.subf %5, %28 : vector<8x256xf32>
    %30 = math.exp %29 : vector<8x256xf32>
    %cst_17 = arith.constant dense<0.000000e+00> : vector<8xf32>
    %31 = vector.multi_reduction <add>, %30, %cst_17 [1] : vector<8x256xf32> to vector<8xf32>
    %32 = vector.shape_cast %31 : vector<8xf32> to vector<8x1xf32>
    %33 = arith.addf %27, %32 : vector<8x1xf32>
    %c0_18 = arith.constant 0 : index
    %c0_19 = arith.constant 0 : index
    %34 = vector.load %arg7[%c0_18, %c0_19] : memref<8x1xf32, #tpu.memory_space<vmem>>, vector<8x1xf32>
    tpu.vector_store %arg7[%c0_18, %c0_19], %33 {strides = array<i32>} : memref<8x1xf32, #tpu.memory_space<vmem>>, vector<8x1xf32>,
    %c0_20 = arith.constant 0 : index
    %c0_21 = arith.constant 0 : index
    %35 = vector.load %arg6[%c0_20, %c0_21] : memref<8x1xf32, #tpu.memory_space<vmem>>, vector<8x1xf32>
    tpu.vector_store %arg6[%c0_20, %c0_21], %23 {strides = array<i32>} : memref<8x1xf32, #tpu.memory_space<vmem>>, vector<8x1xf32>,
    %c0_i32_22 = arith.constant 0 : i32
    %36 = arith.cmpi eq, %arg1, %c0_i32_22 : i32
    %37 = arith.extui %36 : i1 to i32
    %c0_i32_23 = arith.constant 0 : i32
    %38 = arith.cmpi ne, %37, %c0_i32_23 : i32
    scf.if %38 {
      %c0_24 = arith.constant 0 : index
      %c0_25 = arith.constant 0 : index
      %39 = vector.load %arg6[%c0_24, %c0_25] : memref<8x1xf32, #tpu.memory_space<vmem>>, vector<8x1xf32>
      %c0_26 = arith.constant 0 : index
      %c0_27 = arith.constant 0 : index
      %40 = vector.load %arg7[%c0_26, %c0_27] : memref<8x1xf32, #tpu.memory_space<vmem>>, vector<8x1xf32>
      %41 = math.log %40 : vector<8x1xf32>
      %42 = arith.addf %39, %41 : vector<8x1xf32>
      %c0_28 = arith.constant 0 : index
      %c0_29 = arith.constant 0 : index
      %43 = vector.load %arg4[%c0_28, %c0_29] : memref<8x1xi32, #tpu.memory_space<vmem>>, vector<8x1xi32>
      %c-100_i32 = arith.constant -100 : i32
      %44 = vector.broadcast %c-100_i32 : i32 to vector<8x1xi32>
      %45 = arith.cmpi ne, %43, %44 : vector<8x1xi32>
      %c0_30 = arith.constant 0 : index
      %c0_31 = arith.constant 0 : index
      %46 = vector.load %arg8[%c0_30, %c0_31] : memref<8x1xf32, #tpu.memory_space<vmem>>, vector<8x1xf32>
      %47 = arith.subf %42, %46 : vector<8x1xf32>
      %cst_32 = arith.constant 0.000000e+00 : f32
      %48 = vector.broadcast %cst_32 : f32 to vector<8x1xf32>
      %49 = arith.select %45, %47, %48 : vector<8x1xi1>, vector<8x1xf32>
      %c0_33 = arith.constant 0 : index
      %c0_34 = arith.constant 0 : index
      %50 = vector.load %arg5[%c0_33, %c0_34] : memref<8x1xf32, #tpu.memory_space<vmem>>, vector<8x1xf32>
      tpu.vector_store %arg5[%c0_33, %c0_34], %49 {strides = array<i32>} : memref<8x1xf32, #tpu.memory_space<vmem>>, vector<8x1xf32>,
    } else {
    }
    return
  }
  func.func @transform_0(%arg0: i32, %arg1: i32) -> (i32, i32) {
    %c0_i32 = arith.constant 0 : i32
    %c0_i32_0 = arith.constant 0 : i32
    return %arg0, %c0_i32 : i32, i32
  }
  func.func @transform_1(%arg0: i32, %arg1: i32) -> (i32, i32) {
    %c0_i32 = arith.constant 0 : i32
    %c0_i32_0 = arith.constant 0 : i32
    return %arg1, %c0_i32 : i32, i32
  }
  func.func @transform_2(%arg0: i32, %arg1: i32) -> (i32, i32) {
    %c0_i32 = arith.constant 0 : i32
    %c0_i32_0 = arith.constant 0 : i32
    return %arg0, %c0_i32 : i32, i32
  }
  func.func @transform_3(%arg0: i32, %arg1: i32) -> (i32, i32) {
    %c0_i32 = arith.constant 0 : i32
    %c0_i32_0 = arith.constant 0 : i32
    return %arg0, %c0_i32 : i32, i32
  }
}

</mosaic_0001>

<llo_original>
// kernel: tpu_custom_call.1
$region0: #{tpu_custom_call.1}
  #allocation0 [shape = 'u32[]', space=smem, size = 0x4, offset = 0x4, fixed_abs, tag = 'smem constant byte address 0x4 - core index']
  #allocation1 [shape = 'u32[144,128]{1,0:T(1,128)}', space=vmem, size = 0x12000, scoped, tag = 'internal scratch']
  #allocation2 [shape = 'f32[8,1]{1,0:T(8,128)}', space=vmem, size = 0x1000, scoped, tag = 'scratch operand']
  #allocation3 [shape = 'f32[8,1]{1,0:T(8,128)}', space=vmem, size = 0x1000, scoped, tag = 'scratch operand']
  #allocation4 [shape = 'f32[8,1]{1,0:T(8,128)}', space=vmem, size = 0x1000, scoped, tag = 'scratch operand']
  %s0 = inlined_call_operand.vmem [shape: bf16[16,32], index: 0, kind: input, shape index: {}]
  %s1 = inlined_call_operand.vmem [shape: bf16[256,32], index: 1, kind: input, shape index: {}]
  %s2 = inlined_call_operand.vmem [shape: s32[16,1], index: 2, kind: input, shape index: {}]
  %s3 = inlined_call_operand.vmem [shape: f32[16,1], index: 3, kind: output, shape index: {}]
  %s4 = sld [smem:[#allocation0]]
  $region53: #{tpu_custom_call.1} parent=0
    _
  %s6 = ssub.s32 1, %s4
  %s7 = scalar_select 0, %s6, %s4
  loop: start=0, step=1, limit=4
  $region2: #{tpu_custom_call.1} parent=0 // loop_pre_header
    _
  $region3: #{tpu_custom_call.1} parent=0 // loop_header
    %s9 = sphi 0, %s13
    %p10 = scmp.ge.s32.totalorder %s9, 4
    %s16 = sphi 0, %s28
    %s17 = sphi 0, %s24
    %s18 = sphi 0, %s16
    %s19 = sphi 0, %s17
    %s20 = sphi 0, %s18
    %s21 = sphi 0, %s19
    %s31 = sphi 0, %s33
    %s34 = sphi 0, %s31
    %s35 = sphi 0, %s34
    %s51 = sphi 0, %s35
    %s57 = sphi 0, %s59
    %s60 = sphi 0, %s57
    %s61 = sphi 0, %s60
    %s77 = sphi 0, %s61
    %s83 = sphi 0, %s85
    %s86 = sphi 0, %s83
    %s87 = sphi 0, %s86
    %s103 = sphi 0, %s87
    %s109 = sphi 0, %s111
    %s112 = sphi 0, %s109
    %s113 = sphi 0, %s112
    %s129 = sphi 0, %s113
  $region4: #{tpu_custom_call.1} parent=0 // loop_header_branch
    %12 = sbr.rel (%p10) target = $region8
  $region5: #{tpu_custom_call.1} parent=0 // loop_body
    %s14 = ssub.s32 %s9, 1
    %s15 = ssub.s32 %s9, 2
    %s22 = sadd.s32 1, %s17
    %p23 = scmp.ge.s32.totalorder %s22, 1
    %s24 = scalar_select %p23, 0, %s22
    %s25 = sadd.s32 1, %s16
    %s26 = scalar_select %p23, %s25, %s16
    %p27 = scmp.ge.s32.totalorder %s26, 2
    %s28 = scalar_select %p27, 0, %s26
    %s29 = ssub.s32 %s16, %s28
    %p30 = scmp.eq.s32.totalorder %s29, 0
    %s32 = sadd.s32 %s31, 1
    %s33 = scalar_select %p30, %s31, %s32
    %p36 = pneg %p30
    %p37 = scmp.eq.s32.totalorder %s9, 1
    %p38 = por %p36, %p37
    %p39 = scmp.ne.s32.totalorder %s31, %s34
    %p40 = scmp.eq.s32.totalorder %s9, 0
    %p41 = por %p39, %p40
    %p42 = scmp.ne.s32.totalorder %s31, %s34
    %p43 = scmp.eq.s32.totalorder %s14, 1
    %p44 = por %p42, %p43
    %p45 = scmp.ne.s32.totalorder %s34, %s35
    %p46 = scmp.eq.s32.totalorder %s14, 0
    %p47 = por %p45, %p46
    %p48 = scmp.ne.s32.totalorder %s34, %s35
    %p49 = scmp.eq.s32.totalorder %s15, 1
    %p50 = por %p48, %p49
    %p52 = scmp.ne.s32.totalorder %s35, %s51
    %p53 = scmp.eq.s32.totalorder %s15, 0
    %p54 = por %p52, %p53
    %s55 = ssub.s32 %s17, %s24
    %p56 = scmp.eq.s32.totalorder %s55, 0
    %s58 = sadd.s32 %s57, 1
    %s59 = scalar_select %p56, %s57, %s58
    %p62 = pneg %p56
    %p63 = scmp.eq.s32.totalorder %s9, 1
    %p64 = por %p62, %p63
    %p65 = scmp.ne.s32.totalorder %s57, %s60
    %p66 = scmp.eq.s32.totalorder %s9, 0
    %p67 = por %p65, %p66
    %p68 = scmp.ne.s32.totalorder %s57, %s60
    %p69 = scmp.eq.s32.totalorder %s14, 1
    %p70 = por %p68, %p69
    %p71 = scmp.ne.s32.totalorder %s60, %s61
    %p72 = scmp.eq.s32.totalorder %s14, 0
    %p73 = por %p71, %p72
    %p74 = scmp.ne.s32.totalorder %s60, %s61
    %p75 = scmp.eq.s32.totalorder %s15, 1
    %p76 = por %p74, %p75
    %p78 = scmp.ne.s32.totalorder %s61, %s77
    %p79 = scmp.eq.s32.totalorder %s15, 0
    %p80 = por %p78, %p79
    %s81 = ssub.s32 %s16, %s28
    %p82 = scmp.eq.s32.totalorder %s81, 0
    %s84 = sadd.s32 %s83, 1
    %s85 = scalar_select %p82, %s83, %s84
    %p88 = pneg %p82
    %p89 = scmp.eq.s32.totalorder %s9, 1
    %p90 = por %p88, %p89
    %p91 = scmp.ne.s32.totalorder %s83, %s86
    %p92 = scmp.eq.s32.totalorder %s9, 0
    %p93 = por %p91, %p92
    %p94 = scmp.ne.s32.totalorder %s83, %s86
    %p95 = scmp.eq.s32.totalorder %s14, 1
    %p96 = por %p94, %p95
    %p97 = scmp.ne.s32.totalorder %s86, %s87
    %p98 = scmp.eq.s32.totalorder %s14, 0
    %p99 = por %p97, %p98
    %p100 = scmp.ne.s32.totalorder %s86, %s87
    %p101 = scmp.eq.s32.totalorder %s15, 1
    %p102 = por %p100, %p101
    %p104 = scmp.ne.s32.totalorder %s87, %s103
    %p105 = scmp.eq.s32.totalorder %s15, 0
    %p106 = por %p104, %p105
    %s107 = ssub.s32 %s16, %s28
    %p108 = scmp.eq.s32.totalorder %s107, 0
    %s110 = sadd.s32 %s109, 1
    %s111 = scalar_select %p108, %s109, %s110
    %p114 = pneg %p108
    %p115 = scmp.eq.s32.totalorder %s9, 1
    %p116 = por %p114, %p115
    %p117 = scmp.ne.s32.totalorder %s109, %s112
    %p118 = scmp.eq.s32.totalorder %s9, 0
    %p119 = por %p117, %p118
    %p120 = scmp.ne.s32.totalorder %s109, %s112
    %p121 = scmp.eq.s32.totalorder %s14, 1
    %p122 = por %p120, %p121
    %p123 = scmp.ne.s32.totalorder %s112, %s113
    %p124 = scmp.eq.s32.totalorder %s14, 0
    %p125 = por %p123, %p124
    %p126 = scmp.ne.s32.totalorder %s112, %s113
    %p127 = scmp.eq.s32.totalorder %s15, 1
    %p128 = por %p126, %p127
    %p130 = scmp.ne.s32.totalorder %s113, %s129
    %p131 = scmp.eq.s32.totalorder %s15, 0
    %p132 = por %p130, %p131
    %p133 = scmp.le.s32.totalorder 1, %s9
    %p134 = scmp.lt.s32.totalorder %s9, 3
    %p135 = pnand %p133, %p134
    %p136 = pneg %p135
    // Predicated region
    $region9: #{tpu_custom_call.1} parent=5 // pred_check
      _
    $region10: #{tpu_custom_call.1} parent=5 // pred_check_branch
      %138 = sbr.rel (%p135) target = $region12
    $region11: #{tpu_custom_call.1} parent=5 // pred_region
      %s139 = ssub.s32 %s9, 1
      // Predicated region
      $region13: #{tpu_custom_call.1} parent=11 // pred_check
        %p140 = pneg %p47
      $region14: #{tpu_custom_call.1} parent=11 // pred_check_branch
        %142 = sbr.rel (%p140) target = $region16
      $region15: #{tpu_custom_call.1} parent=11 // pred_region
        %p143 = scmp.lt.s32.totalorder %s18, 1
        %s144 = scalar_select %p143, %s18, 1
        %s145 = smul.addr %s144, 4
        %s146 = scalar_lea.vmem %s0, %s145
      $region16: #{tpu_custom_call.1} parent=11 // pred_fallthru
        _
      // Predicated region
      $region17: #{tpu_custom_call.1} parent=11 // pred_check
        %p147 = pneg %p73
      $region18: #{tpu_custom_call.1} parent=11 // pred_check_branch
        %149 = sbr.rel (%p147) target = $region20
      $region19: #{tpu_custom_call.1} parent=11 // pred_region
        %s150 = smul.u32 32, %s19
        %p151 = scmp.lt.s32.totalorder %s150, 31
        %s152 = scalar_select %p151, %s150, 31
        %s153 = smul.addr %s152, 4
        %s154 = scalar_lea.vmem %s1, %s153
        %s155 = smul.u32 32, %s19
      $region20: #{tpu_custom_call.1} parent=11 // pred_fallthru
        _
      // Predicated region
      $region21: #{tpu_custom_call.1} parent=11 // pred_check
        %p156 = pneg %p99
      $region22: #{tpu_custom_call.1} parent=11 // pred_check_branch
        %158 = sbr.rel (%p156) target = $region24
      $region23: #{tpu_custom_call.1} parent=11 // pred_region
        %p159 = scmp.lt.s32.totalorder %s18, 1
        %s160 = scalar_select %p159, %s18, 1
        %s161 = smul.addr %s160, 8
        %s162 = scalar_lea.vmem %s2, %s161
      $region24: #{tpu_custom_call.1} parent=11 // pred_fallthru
        _
    $region12: #{tpu_custom_call.1} parent=5 // pred_fallthru
      _
    %p163 = scmp.lt.s32.totalorder %s9, 2
    // Predicated region
    $region25: #{tpu_custom_call.1} parent=5 // pred_check
      %p164 = pneg %p163
    $region26: #{tpu_custom_call.1} parent=5 // pred_check_branch
      %166 = sbr.rel (%p164) target = $region28
    $region27: #{tpu_custom_call.1} parent=5 // pred_region
      _
    $region28: #{tpu_custom_call.1} parent=5 // pred_fallthru
      _
    %p167 = scmp.le.s32.totalorder 1, %s9
    %p168 = scmp.lt.s32.totalorder %s9, 3
    %p169 = pnand %p167, %p168
    %p170 = pneg %p169
    // Predicated region
    $region29: #{tpu_custom_call.1} parent=5 // pred_check
      _
    $region30: #{tpu_custom_call.1} parent=5 // pred_check_branch
      %172 = sbr.rel (%p169) target = $region32
    $region31: #{tpu_custom_call.1} parent=5 // pred_region
      %s173 = ssub.s32 %s9, 1
      %p174 = scmp.lt.s32.totalorder %s18, 1
      %s175 = scalar_select %p174, %s18, 1
      %s176 = smul.addr %s175, 4
      %s177 = scalar_lea.vmem %s0, %s176
      %p178 = pneg %p47
      %p179 = pneg %p44
      %s180 = smul.u32 32, %s19
      %p181 = scmp.lt.s32.totalorder %s180, 31
      %s182 = scalar_select %p181, %s180, 31
      %s183 = smul.addr %s182, 4
      %s184 = scalar_lea.vmem %s1, %s183
      %p185 = pneg %p73
      %p186 = pneg %p70
      %p187 = scmp.lt.s32.totalorder %s18, 1
      %s188 = scalar_select %p187, %s18, 1
      %s189 = smul.addr %s188, 8
      %s190 = scalar_lea.vmem %s2, %s189
      %p191 = pneg %p99
      %p192 = pneg %p96
      %p193 = pneg %p125
      %p194 = pneg %p122
      %p195 = scmp.lt.s32.totalorder %s18, 1
      %s196 = scalar_select %p195, %s18, 1
      %s197 = smul.addr %s196, 8
      %s198 = scalar_lea.vmem %s3, %s197
      %p199 = scmp.lt.s32.totalorder %s18, 1
      %s200 = scalar_select %p199, %s18, 1
      %s201 = smul.addr %s200, 4
      %s202 = scalar_lea.vmem %s0, %s201
      %s203 = smul.u32 32, %s19
      %p204 = scmp.lt.s32.totalorder %s203, 31
      %s205 = scalar_select %p204, %s203, 31
      %s206 = smul.addr %s205, 4
      %s207 = scalar_lea.vmem %s1, %s206
      %s208 = smul.u32 32, %s19
      %p209 = scmp.lt.s32.totalorder %s18, 1
      %s210 = scalar_select %p209, %s18, 1
      %s211 = smul.addr %s210, 8
      %s212 = scalar_lea.vmem %s2, %s211
      %p213 = scmp.lt.s32.totalorder %s18, 1
      %s214 = scalar_select %p213, %s18, 1
      %s215 = smul.addr %s214, 8
      %s216 = scalar_lea.vmem %s3, %s215
      %p218 = scmp.eq.s32.totalorder %s19, 0
      // Predicated region
      $region33: #{tpu_custom_call.1} parent=31 // pred_check
        %p219 = pneg %p218
      $region34: #{tpu_custom_call.1} parent=31 // pred_check_branch
        %221 = sbr.rel (%p219) target = $region36
      $region35: #{tpu_custom_call.1} parent=31 // pred_region
        %vm222 = vcmask 7168
        %223 = vst.msk [vmem:[#allocation2] sm:$0xff] %vm222, -inf
        %224 = vst.msk [vmem:[#allocation3] sm:$0xff] %vm222, 0.0
        %225 = vst.msk [vmem:[#allocation4] sm:$0xff] %vm222, 0.0
      $region36: #{tpu_custom_call.1} parent=31 // pred_fallthru
        _
      %v226 = vld [vmem:[%s202] sm:$0xf]
      %v227 = vld [vmem:[%s207] sm:$0xf]
      %v228 = vld [vmem:[%s207 + $0x4] sm:$0xf]
      %v229 = vld [vmem:[%s207 + $0x8] sm:$0xf]
      %v230 = vld [vmem:[%s207 + $0xc] sm:$0xf]
      %v231 = vld [vmem:[%s207 + $0x10] sm:$0xf]
      %v232 = vld [vmem:[%s207 + $0x14] sm:$0xf]
      %v233 = vld [vmem:[%s207 + $0x18] sm:$0xf]
      %v234 = vld [vmem:[%s207 + $0x1c] sm:$0xf]
      %v235 = vld [vmem:[%s207 + $0x20] sm:$0xf]
      %v236 = vld [vmem:[%s207 + $0x24] sm:$0xf]
      %v237 = vld [vmem:[%s207 + $0x28] sm:$0xf]
      %v238 = vld [vmem:[%s207 + $0x2c] sm:$0xf]
      %v239 = vld [vmem:[%s207 + $0x30] sm:$0xf]
      %v240 = vld [vmem:[%s207 + $0x34] sm:$0xf]
      %v241 = vld [vmem:[%s207 + $0x38] sm:$0xf]
      %v242 = vld [vmem:[%s207 + $0x3c] sm:$0xf]
      %v243 = vld [vmem:[%s207 + $0x40] sm:$0xf]
      %v244 = vld [vmem:[%s207 + $0x44] sm:$0xf]
      %v245 = vld [vmem:[%s207 + $0x48] sm:$0xf]
      %v246 = vld [vmem:[%s207 + $0x4c] sm:$0xf]
      %v247 = vld [vmem:[%s207 + $0x50] sm:$0xf]
      %v248 = vld [vmem:[%s207 + $0x54] sm:$0xf]
      %v249 = vld [vmem:[%s207 + $0x58] sm:$0xf]
      %v250 = vld [vmem:[%s207 + $0x5c] sm:$0xf]
      %v251 = vld [vmem:[%s207 + $0x60] sm:$0xf]
      %v252 = vld [vmem:[%s207 + $0x64] sm:$0xf]
      %v253 = vld [vmem:[%s207 + $0x68] sm:$0xf]
      %v254 = vld [vmem:[%s207 + $0x6c] sm:$0xf]
      %v255 = vld [vmem:[%s207 + $0x70] sm:$0xf]
      %v256 = vld [vmem:[%s207 + $0x74] sm:$0xf]
      %v257 = vld [vmem:[%s207 + $0x78] sm:$0xf]
      %v258 = vld [vmem:[%s207 + $0x7c] sm:$0xf]
      %v291 = vunpack.c.l.b16 %v227
      %v292 = vunpack.c.l.b16 %v228
      %v293 = vunpack.c.l.b16 %v229
      %v294 = vunpack.c.l.b16 %v230
      %v295 = vunpack.c.l.b16 %v231
      %v296 = vunpack.c.l.b16 %v232
      %v297 = vunpack.c.l.b16 %v233
      %v298 = vunpack.c.l.b16 %v234
      %v299 = vunpack.c.l.b16 %v235
      %v300 = vunpack.c.l.b16 %v236
      %v301 = vunpack.c.l.b16 %v237
      %v302 = vunpack.c.l.b16 %v238
      %v303 = vunpack.c.l.b16 %v239
      %v304 = vunpack.c.l.b16 %v240
      %v305 = vunpack.c.l.b16 %v241
      %v306 = vunpack.c.l.b16 %v242
      %v307 = vunpack.c.l.b16 %v243
      %v308 = vunpack.c.l.b16 %v244
      %v309 = vunpack.c.l.b16 %v245
      %v310 = vunpack.c.l.b16 %v246
      %v311 = vunpack.c.l.b16 %v247
      %v312 = vunpack.c.l.b16 %v248
      %v313 = vunpack.c.l.b16 %v249
      %v314 = vunpack.c.l.b16 %v250
      %v315 = vunpack.c.l.b16 %v251
      %v316 = vunpack.c.l.b16 %v252
      %v317 = vunpack.c.l.b16 %v253
      %v318 = vunpack.c.l.b16 %v254
      %v319 = vunpack.c.l.b16 %v255
      %v320 = vunpack.c.l.b16 %v256
      %v321 = vunpack.c.l.b16 %v257
      %v322 = vunpack.c.l.b16 %v258
      %v323 = vpack.c.b16 %v292, %v291
      %v324 = vpack.c.b16 %v294, %v293
      %v325 = vpack.c.b16 %v296, %v295
      %v326 = vpack.c.b16 %v298, %v297
      %v327 = vpack.c.b16 %v300, %v299
      %v328 = vpack.c.b16 %v302, %v301
      %v329 = vpack.c.b16 %v304, %v303
      %v330 = vpack.c.b16 %v306, %v305
      %v331 = vpack.c.b16 %v308, %v307
      %v332 = vpack.c.b16 %v310, %v309
      %v333 = vpack.c.b16 %v312, %v311
      %v334 = vpack.c.b16 %v314, %v313
      %v335 = vpack.c.b16 %v316, %v315
      %v336 = vpack.c.b16 %v318, %v317
      %v337 = vpack.c.b16 %v320, %v319
      %v338 = vpack.c.b16 %v322, %v321
      %vm339 = vcmask 261120
      %v341 = vsel %vm339, %v226, 0
      %v344 = vsel %vm339, %v323, 0
      %v347 = vsel %vm339, %v324, 0
      %v350 = vsel %vm339, %v325, 0
      %v353 = vsel %vm339, %v326, 0
      %v356 = vsel %vm339, %v327, 0
      %v359 = vsel %vm339, %v328, 0
      %v362 = vsel %vm339, %v329, 0
      %v365 = vsel %vm339, %v330, 0
      %v368 = vsel %vm339, %v331, 0
      %v371 = vsel %vm339, %v332, 0
      %v374 = vsel %vm339, %v333, 0
      %v377 = vsel %vm339, %v334, 0
      %v380 = vsel %vm339, %v335, 0
      %v383 = vsel %vm339, %v336, 0
      %v386 = vsel %vm339, %v337, 0
      %v389 = vsel %vm339, %v338, 0
      %391 = vmatprep.subr.bf16.mxu0 0
      %392 = vmatpush1.bf16.xpose.msra.mxu0 %v344
      %393 = vmatprep.subr.bf16.mxu0 0
      %394 = vmatpush1.bf16.xpose.msra.mxu0 %v347
      %395 = vmatprep.subr.bf16.mxu0 0
      %396 = vmatpush1.bf16.xpose.msra.mxu0 %v350
      %397 = vmatprep.subr.bf16.mxu0 0
      %398 = vmatpush1.bf16.xpose.msra.mxu0 %v353
      %399 = vmatprep.subr.bf16.mxu0 0
      %400 = vmatpush1.bf16.xpose.msra.mxu0 %v356
      %401 = vmatprep.subr.bf16.mxu0 0
      %402 = vmatpush1.bf16.xpose.msra.mxu0 %v359
      %403 = vmatprep.subr.bf16.mxu0 0
      %404 = vmatpush1.bf16.xpose.msra.mxu0 %v362
      %405 = vmatprep.subr.bf16.mxu0 0
      %406 = vmatpush1.bf16.xpose.msra.mxu0 %v365
      %407 = vmatprep.subr.bf16.mxu0 0
      %408 = vmatpush1.bf16.xpose.msra.mxu0 %v368
      %409 = vmatprep.subr.bf16.mxu0 0
      %410 = vmatpush1.bf16.xpose.msra.mxu0 %v371
      %411 = vmatprep.subr.bf16.mxu0 0
      %412 = vmatpush1.bf16.xpose.msra.mxu0 %v374
      %413 = vmatprep.subr.bf16.mxu0 0
      %414 = vmatpush1.bf16.xpose.msra.mxu0 %v377
      %415 = vmatprep.subr.bf16.mxu0 0
      %416 = vmatpush1.bf16.xpose.msra.mxu0 %v380
      %417 = vmatprep.subr.bf16.mxu0 0
      %418 = vmatpush1.bf16.xpose.msra.mxu0 %v383
      %419 = vmatprep.subr.bf16.mxu0 0
      %420 = vmatpush1.bf16.xpose.msra.mxu0 %v386
      %421 = vmatprep.subr.bf16.mxu0 0
      %422 = vmatpush1.bf16.xpose.msra.mxu0 %v389
      %423 = vmatprep.mubr.bf16.mxu0 0
      %424 = vmatmul.mubr.bf16.gmra.mrb[0].mxu0 %v341
      %v425 = vpop.f32.mrb[0].mxu0
      %v426 = vadd.f32 0.0, %v425
      %v427 = vpop.f32.mrb[0].mxu0
      %v428 = vadd.f32 0.0, %v427
      %v429 = vpop.f32.mrb[0].mxu0
      %v430 = vpop.f32.mrb[0].mxu0
      %431 = vdwg.mxu0
      %v432 = vlaneseq
      %v433 = vand.u32 %v432, 127
      %v434 = vadd.s32 %v433, 128
      %v435 = vld [vmem:[%s212] sm:$0xff]
      %s436 = smul.u32 %s19, 256
      %v437 = vstv %s436
      %v438 = vsub.s32 %v435, %v437
      %439 = vset.pattern.permute.xlu0 0
      %440 = vperm.xlu0 %439, %v438
      %v441 = vpop.permute.xlu0 %440
      %vm442 = vcmp.eq.s32.totalorder %v433, %v441
      %vm443 = vcmp.eq.s32.totalorder %v434, %v441
      %v444 = vld [vmem:[#allocation4] sm:$0xff]
      %v445 = vsel %vm442, %v426, 0.0
      %v446 = vsel %vm443, %v428, 0.0
      %v447 = vadd.f32 %v445, %v446
      %448 = vadd.xlane.f32.xlu0 %v447
      %v449 = vpop.xlane.xlu0 %448
      %v450 = vadd.f32 %v444, %v449
      %vm451 = vcmask 7168
      %452 = vst.msk [vmem:[#allocation4] sm:$0xff] %vm451, %v450
      %v453 = vld [vmem:[#allocation2] sm:$0xff]
      %v454 = vmax.f32 %v426, %v428
      %455 = vmax.xlane.f32.xlu0 %v454
      %v456 = vpop.xlane.xlu0 %455
      %v457 = vmax.f32 %v453, %v456
      %v458 = vld [vmem:[#allocation3] sm:$0xff]
      %v459 = vsub.f32 %v453, %v457
      %v460 = vmul.f32 %v459, 1.442695
      %v461 = vpow.pop %v460
      %v462 = vmul.f32 %v458, %v461
      %464 = vset.pattern.permute.xlu0 0
      %465 = vperm.xlu0 %464, %v457
      %v466 = vpop.permute.xlu0 %465
      %v468 = vsub.f32 %v426, %v466
      %v469 = vsub.f32 %v428, %v466
      %v470 = vmul.f32 %v468, 1.442695
      %v471 = vpow.pop %v470
      %v472 = vmul.f32 %v469, 1.442695
      %v473 = vpow.pop %v472
      %v474 = vadd.f32 %v471, %v473
      %475 = vadd.xlane.f32.xlu0 %v474
      %v476 = vpop.xlane.xlu0 %475
      %v477 = vadd.f32 %v462, %v476
      %478 = vst.msk [vmem:[#allocation3] sm:$0xff] %vm451, %v477
      %479 = vst.msk [vmem:[#allocation2] sm:$0xff] %vm451, %v457
      // Predicated region
      $region37: #{tpu_custom_call.1} parent=31 // pred_check
        %p480 = pneg %p218
      $region38: #{tpu_custom_call.1} parent=31 // pred_check_branch
        %482 = sbr.rel (%p480) target = $region40
      $region39: #{tpu_custom_call.1} parent=31 // pred_region
        %v483 = vld [vmem:[#allocation2] sm:$0xff]
        %v484 = vld [vmem:[#allocation3] sm:$0xff]
        %v485 = vlog2.pop %v484
        %v486 = vmul.f32 %v485, 0.6931472
        %v487 = vadd.f32 %v483, %v486
        %v488 = vld [vmem:[%s212] sm:$0xff]
        %vm489 = vcmp.ne.s32.totalorder %v488, 4294967196
        %v490 = vld [vmem:[#allocation4] sm:$0xff]
        %v491 = vsub.f32 %v487, %v490
        %v492 = vsel %vm489, %v491, 0.0
        %493 = vst.msk [vmem:[%s216] sm:$0xff] %vm451, %v492
      $region40: #{tpu_custom_call.1} parent=31 // pred_fallthru
        _
      %p494 = scmp.lt.s32.totalorder %s18, 1
      %s495 = scalar_select %p494, %s18, 1
      %s496 = smul.addr %s495, 8
      %s497 = scalar_lea.vmem %s3, %s496
      // Predicated region
      $region41: #{tpu_custom_call.1} parent=31 // pred_check
        %p498 = pneg %p122
      $region42: #{tpu_custom_call.1} parent=31 // pred_check_branch
        %500 = sbr.rel (%p498) target = $region44
      $region43: #{tpu_custom_call.1} parent=31 // pred_region
        _
      $region44: #{tpu_custom_call.1} parent=31 // pred_fallthru
        _
    $region32: #{tpu_custom_call.1} parent=5 // pred_fallthru
      _
    %p501 = scmp.le.s32.totalorder 2, %s9
    // Predicated region
    $region45: #{tpu_custom_call.1} parent=5 // pred_check
      %p502 = pneg %p501
    $region46: #{tpu_custom_call.1} parent=5 // pred_check_branch
      %504 = sbr.rel (%p502) target = $region48
    $region47: #{tpu_custom_call.1} parent=5 // pred_region
      %s505 = ssub.s32 %s9, 2
      // Predicated region
      $region49: #{tpu_custom_call.1} parent=47 // pred_check
        %p506 = pneg %p128
      $region50: #{tpu_custom_call.1} parent=47 // pred_check_branch
        %508 = sbr.rel (%p506) target = $region52
      $region51: #{tpu_custom_call.1} parent=47 // pred_region
        %p509 = scmp.lt.s32.totalorder %s20, 1
        %s510 = scalar_select %p509, %s20, 1
        %s511 = smul.addr %s510, 8
        %s512 = scalar_lea.vmem %s3, %s511
      $region52: #{tpu_custom_call.1} parent=47 // pred_fallthru
        _
    $region48: #{tpu_custom_call.1} parent=5 // pred_fallthru
      _
  $region6: #{tpu_custom_call.1} parent=0 // loop_footer
    %s13 = sadd.s32 1, %s9
  $region7: #{tpu_custom_call.1} parent=0 // loop_footer_branch
    %8 = sbr.rel target = $region3
  $region8: #{tpu_custom_call.1} parent=0 // loop_exit
    _

// kernel: tpu_custom_call.1
$region0: #{tpu_custom_call.1}
  #allocation0 [shape = 'u32[]', space=smem, size = 0x4, offset = 0x4, fixed_abs, tag = 'smem constant byte address 0x4 - core index']
  #allocation1 [shape = 'u32[144,128]{1,0:T(1,128)}', space=vmem, size = 0x12000, scoped, tag = 'internal scratch']
  #allocation2 [shape = 'f32[8,1]{1,0:T(8,128)}', space=vmem, size = 0x1000, scoped, tag = 'scratch operand']
  #allocation3 [shape = 'f32[8,1]{1,0:T(8,128)}', space=vmem, size = 0x1000, scoped, tag = 'scratch operand']
  #allocation4 [shape = 'f32[8,1]{1,0:T(8,128)}', space=vmem, size = 0x1000, scoped, tag = 'scratch operand']
  %s0 = inlined_call_operand.vmem [shape: bf16[16,32], index: 0, kind: input, shape index: {}]
  %s1 = inlined_call_operand.vmem [shape: bf16[256,32], index: 1, kind: input, shape index: {}]
  %s2 = inlined_call_operand.vmem [shape: s32[16,1], index: 2, kind: input, shape index: {}]
  %s3 = inlined_call_operand.vmem [shape: f32[16,1], index: 3, kind: output, shape index: {}]
  %s4 = sld [smem:[#allocation0]]
  $region53: #{tpu_custom_call.1} parent=0
    _
  %s6 = ssub.s32 1, %s4
  %s7 = scalar_select 0, %s6, %s4
  loop: start=0, step=1, limit=4
  $region2: #{tpu_custom_call.1} parent=0 // loop_pre_header
    _
  $region3: #{tpu_custom_call.1} parent=0 // loop_header
    %s9 = sphi 0, %s13
    %p10 = scmp.ge.s32.totalorder %s9, 4
    %s16 = sphi 0, %s28
    %s17 = sphi 0, %s24
    %s18 = sphi 0, %s16
    %s19 = sphi 0, %s17
    %s20 = sphi 0, %s18
    %s21 = sphi 0, %s19
    %s31 = sphi 0, %s33
    %s34 = sphi 0, %s31
    %s35 = sphi 0, %s34
    %s51 = sphi 0, %s35
    %s57 = sphi 0, %s59
    %s60 = sphi 0, %s57
    %s61 = sphi 0, %s60
    %s77 = sphi 0, %s61
    %s83 = sphi 0, %s85
    %s86 = sphi 0, %s83
    %s87 = sphi 0, %s86
    %s103 = sphi 0, %s87
    %s109 = sphi 0, %s111
    %s112 = sphi 0, %s109
    %s113 = sphi 0, %s112
    %s129 = sphi 0, %s113
  $region4: #{tpu_custom_call.1} parent=0 // loop_header_branch
    %12 = sbr.rel (%p10) target = $region8
  $region5: #{tpu_custom_call.1} parent=0 // loop_body
    %s14 = ssub.s32 %s9, 1
    %s15 = ssub.s32 %s9, 2
    %s22 = sadd.s32 1, %s17
    %p23 = scmp.ge.s32.totalorder %s22, 1
    %s24 = scalar_select %p23, 0, %s22
    %s25 = sadd.s32 1, %s16
    %s26 = scalar_select %p23, %s25, %s16
    %p27 = scmp.ge.s32.totalorder %s26, 2
    %s28 = scalar_select %p27, 0, %s26
    %s29 = ssub.s32 %s16, %s28
    %p30 = scmp.eq.s32.totalorder %s29, 0
    %s32 = sadd.s32 %s31, 1
    %s33 = scalar_select %p30, %s31, %s32
    %p36 = pneg %p30
    %p37 = scmp.eq.s32.totalorder %s9, 1
    %p38 = por %p36, %p37
    %p39 = scmp.ne.s32.totalorder %s31, %s34
    %p40 = scmp.eq.s32.totalorder %s9, 0
    %p41 = por %p39, %p40
    %p42 = scmp.ne.s32.totalorder %s31, %s34
    %p43 = scmp.eq.s32.totalorder %s14, 1
    %p44 = por %p42, %p43
    %p45 = scmp.ne.s32.totalorder %s34, %s35
    %p46 = scmp.eq.s32.totalorder %s14, 0
    %p47 = por %p45, %p46
    %p48 = scmp.ne.s32.totalorder %s34, %s35
    %p49 = scmp.eq.s32.totalorder %s15, 1
    %p50 = por %p48, %p49
    %p52 = scmp.ne.s32.totalorder %s35, %s51
    %p53 = scmp.eq.s32.totalorder %s15, 0
    %p54 = por %p52, %p53
    %s55 = ssub.s32 %s17, %s24
    %p56 = scmp.eq.s32.totalorder %s55, 0
    %s58 = sadd.s32 %s57, 1
    %s59 = scalar_select %p56, %s57, %s58
    %p62 = pneg %p56
    %p63 = scmp.eq.s32.totalorder %s9, 1
    %p64 = por %p62, %p63
    %p65 = scmp.ne.s32.totalorder %s57, %s60
    %p66 = scmp.eq.s32.totalorder %s9, 0
    %p67 = por %p65, %p66
    %p68 = scmp.ne.s32.totalorder %s57, %s60
    %p69 = scmp.eq.s32.totalorder %s14, 1
    %p70 = por %p68, %p69
    %p71 = scmp.ne.s32.totalorder %s60, %s61
    %p72 = scmp.eq.s32.totalorder %s14, 0
    %p73 = por %p71, %p72
    %p74 = scmp.ne.s32.totalorder %s60, %s61
    %p75 = scmp.eq.s32.totalorder %s15, 1
    %p76 = por %p74, %p75
    %p78 = scmp.ne.s32.totalorder %s61, %s77
    %p79 = scmp.eq.s32.totalorder %s15, 0
    %p80 = por %p78, %p79
    %s81 = ssub.s32 %s16, %s28
    %p82 = scmp.eq.s32.totalorder %s81, 0
    %s84 = sadd.s32 %s83, 1
    %s85 = scalar_select %p82, %s83, %s84
    %p88 = pneg %p82
    %p89 = scmp.eq.s32.totalorder %s9, 1
    %p90 = por %p88, %p89
    %p91 = scmp.ne.s32.totalorder %s83, %s86
    %p92 = scmp.eq.s32.totalorder %s9, 0
    %p93 = por %p91, %p92
    %p94 = scmp.ne.s32.totalorder %s83, %s86
    %p95 = scmp.eq.s32.totalorder %s14, 1
    %p96 = por %p94, %p95
    %p97 = scmp.ne.s32.totalorder %s86, %s87
    %p98 = scmp.eq.s32.totalorder %s14, 0
    %p99 = por %p97, %p98
    %p100 = scmp.ne.s32.totalorder %s86, %s87
    %p101 = scmp.eq.s32.totalorder %s15, 1
    %p102 = por %p100, %p101
    %p104 = scmp.ne.s32.totalorder %s87, %s103
    %p105 = scmp.eq.s32.totalorder %s15, 0
    %p106 = por %p104, %p105
    %s107 = ssub.s32 %s16, %s28
    %p108 = scmp.eq.s32.totalorder %s107, 0
    %s110 = sadd.s32 %s109, 1
    %s111 = scalar_select %p108, %s109, %s110
    %p114 = pneg %p108
    %p115 = scmp.eq.s32.totalorder %s9, 1
    %p116 = por %p114, %p115
    %p117 = scmp.ne.s32.totalorder %s109, %s112
    %p118 = scmp.eq.s32.totalorder %s9, 0
    %p119 = por %p117, %p118
    %p120 = scmp.ne.s32.totalorder %s109, %s112
    %p121 = scmp.eq.s32.totalorder %s14, 1
    %p122 = por %p120, %p121
    %p123 = scmp.ne.s32.totalorder %s112, %s113
    %p124 = scmp.eq.s32.totalorder %s14, 0
    %p125 = por %p123, %p124
    %p126 = scmp.ne.s32.totalorder %s112, %s113
    %p127 = scmp.eq.s32.totalorder %s15, 1
    %p128 = por %p126, %p127
    %p130 = scmp.ne.s32.totalorder %s113, %s129
    %p131 = scmp.eq.s32.totalorder %s15, 0
    %p132 = por %p130, %p131
    %p133 = scmp.le.s32.totalorder 1, %s9
    %p134 = scmp.lt.s32.totalorder %s9, 3
    %p135 = pnand %p133, %p134
    %p136 = pneg %p135
    // Predicated region
    $region9: #{tpu_custom_call.1} parent=5 // pred_check
      _
    $region10: #{tpu_custom_call.1} parent=5 // pred_check_branch
      %138 = sbr.rel (%p135) target = $region12
    $region11: #{tpu_custom_call.1} parent=5 // pred_region
      %s139 = ssub.s32 %s9, 1
      // Predicated region
      $region13: #{tpu_custom_call.1} parent=11 // pred_check
        %p140 = pneg %p73
      $region14: #{tpu_custom_call.1} parent=11 // pred_check_branch
        %142 = sbr.rel (%p140) target = $region16
      $region15: #{tpu_custom_call.1} parent=11 // pred_region
        %s143 = smul.u32 32, %s19
        %p144 = scmp.lt.s32.totalorder %s143, 31
        %s145 = scalar_select %p144, %s143, 31
        %s146 = smul.addr %s145, 4
        %s147 = scalar_lea.vmem %s1, %s146
        %s148 = smul.u32 32, %s19
      $region16: #{tpu_custom_call.1} parent=11 // pred_fallthru
        _
    $region12: #{tpu_custom_call.1} parent=5 // pred_fallthru
      _
    %p149 = scmp.lt.s32.totalorder %s9, 2
    // Predicated region
    $region17: #{tpu_custom_call.1} parent=5 // pred_check
      %p150 = pneg %p149
    $region18: #{tpu_custom_call.1} parent=5 // pred_check_branch
      %152 = sbr.rel (%p150) target = $region20
    $region19: #{tpu_custom_call.1} parent=5 // pred_region
      // Predicated region
      $region21: #{tpu_custom_call.1} parent=19 // pred_check
        %p153 = pneg %p41
      $region22: #{tpu_custom_call.1} parent=19 // pred_check_branch
        %155 = sbr.rel (%p153) target = $region24
      $region23: #{tpu_custom_call.1} parent=19 // pred_region
        %p156 = scmp.lt.s32.totalorder %s16, 1
        %s157 = scalar_select %p156, %s16, 1
        %s158 = smul.addr %s157, 4
        %s159 = scalar_lea.vmem %s0, %s158
      $region24: #{tpu_custom_call.1} parent=19 // pred_fallthru
        _
      // Predicated region
      $region25: #{tpu_custom_call.1} parent=19 // pred_check
        %p160 = pneg %p93
      $region26: #{tpu_custom_call.1} parent=19 // pred_check_branch
        %162 = sbr.rel (%p160) target = $region28
      $region27: #{tpu_custom_call.1} parent=19 // pred_region
        %p163 = scmp.lt.s32.totalorder %s16, 1
        %s164 = scalar_select %p163, %s16, 1
        %s165 = smul.addr %s164, 8
        %s166 = scalar_lea.vmem %s2, %s165
      $region28: #{tpu_custom_call.1} parent=19 // pred_fallthru
        _
    $region20: #{tpu_custom_call.1} parent=5 // pred_fallthru
      _
    %p167 = scmp.le.s32.totalorder 1, %s9
    %p168 = scmp.lt.s32.totalorder %s9, 3
    %p169 = pnand %p167, %p168
    %p170 = pneg %p169
    // Predicated region
    $region29: #{tpu_custom_call.1} parent=5 // pred_check
      _
    $region30: #{tpu_custom_call.1} parent=5 // pred_check_branch
      %172 = sbr.rel (%p169) target = $region32
    $region31: #{tpu_custom_call.1} parent=5 // pred_region
      %s173 = ssub.s32 %s9, 1
      %p174 = scmp.lt.s32.totalorder %s18, 1
      %s175 = scalar_select %p174, %s18, 1
      %s176 = smul.addr %s175, 4
      %s177 = scalar_lea.vmem %s0, %s176
      %p178 = pneg %p47
      %p179 = pneg %p44
      %s180 = smul.u32 32, %s19
      %p181 = scmp.lt.s32.totalorder %s180, 31
      %s182 = scalar_select %p181, %s180, 31
      %s183 = smul.addr %s182, 4
      %s184 = scalar_lea.vmem %s1, %s183
      %p185 = pneg %p73
      %p186 = pneg %p70
      %p187 = scmp.lt.s32.totalorder %s18, 1
      %s188 = scalar_select %p187, %s18, 1
      %s189 = smul.addr %s188, 8
      %s190 = scalar_lea.vmem %s2, %s189
      %p191 = pneg %p99
      %p192 = pneg %p96
      %p193 = pneg %p125
      %p194 = pneg %p122
      %p195 = scmp.lt.s32.totalorder %s18, 1
      %s196 = scalar_select %p195, %s18, 1
      %s197 = smul.addr %s196, 8
      %s198 = scalar_lea.vmem %s3, %s197
      %p199 = scmp.lt.s32.totalorder %s18, 1
      %s200 = scalar_select %p199, %s18, 1
      %s201 = smul.addr %s200, 4
      %s202 = scalar_lea.vmem %s0, %s201
      %s203 = smul.u32 32, %s19
      %p204 = scmp.lt.s32.totalorder %s203, 31
      %s205 = scalar_select %p204, %s203, 31
      %s206 = smul.addr %s205, 4
      %s207 = scalar_lea.vmem %s1, %s206
      %s208 = smul.u32 32, %s19
      %p209 = scmp.lt.s32.totalorder %s18, 1
      %s210 = scalar_select %p209, %s18, 1
      %s211 = smul.addr %s210, 8
      %s212 = scalar_lea.vmem %s2, %s211
      %p213 = scmp.lt.s32.totalorder %s18, 1
      %s214 = scalar_select %p213, %s18, 1
      %s215 = smul.addr %s214, 8
      %s216 = scalar_lea.vmem %s3, %s215
      %p218 = scmp.eq.s32.totalorder %s19, 0
      // Predicated region
      $region33: #{tpu_custom_call.1} parent=31 // pred_check
        %p219 = pneg %p218
      $region34: #{tpu_custom_call.1} parent=31 // pred_check_branch
        %221 = sbr.rel (%p219) target = $region36
      $region35: #{tpu_custom_call.1} parent=31 // pred_region
        %vm222 = vcmask 7168
        %223 = vst.msk [vmem:[#allocation2] sm:$0xff] %vm222, -inf
        %224 = vst.msk [vmem:[#allocation3] sm:$0xff] %vm222, 0.0
        %225 = vst.msk [vmem:[#allocation4] sm:$0xff] %vm222, 0.0
      $region36: #{tpu_custom_call.1} parent=31 // pred_fallthru
        _
      %v226 = vld [vmem:[%s202] sm:$0xf]
      %v227 = vld [vmem:[%s207] sm:$0xf]
      %v228 = vld [vmem:[%s207 + $0x4] sm:$0xf]
      %v229 = vld [vmem:[%s207 + $0x8] sm:$0xf]
      %v230 = vld [vmem:[%s207 + $0xc] sm:$0xf]
      %v231 = vld [vmem:[%s207 + $0x10] sm:$0xf]
      %v232 = vld [vmem:[%s207 + $0x14] sm:$0xf]
      %v233 = vld [vmem:[%s207 + $0x18] sm:$0xf]
      %v234 = vld [vmem:[%s207 + $0x1c] sm:$0xf]
      %v235 = vld [vmem:[%s207 + $0x20] sm:$0xf]
      %v236 = vld [vmem:[%s207 + $0x24] sm:$0xf]
      %v237 = vld [vmem:[%s207 + $0x28] sm:$0xf]
      %v238 = vld [vmem:[%s207 + $0x2c] sm:$0xf]
      %v239 = vld [vmem:[%s207 + $0x30] sm:$0xf]
      %v240 = vld [vmem:[%s207 + $0x34] sm:$0xf]
      %v241 = vld [vmem:[%s207 + $0x38] sm:$0xf]
      %v242 = vld [vmem:[%s207 + $0x3c] sm:$0xf]
      %v243 = vld [vmem:[%s207 + $0x40] sm:$0xf]
      %v244 = vld [vmem:[%s207 + $0x44] sm:$0xf]
      %v245 = vld [vmem:[%s207 + $0x48] sm:$0xf]
      %v246 = vld [vmem:[%s207 + $0x4c] sm:$0xf]
      %v247 = vld [vmem:[%s207 + $0x50] sm:$0xf]
      %v248 = vld [vmem:[%s207 + $0x54] sm:$0xf]
      %v249 = vld [vmem:[%s207 + $0x58] sm:$0xf]
      %v250 = vld [vmem:[%s207 + $0x5c] sm:$0xf]
      %v251 = vld [vmem:[%s207 + $0x60] sm:$0xf]
      %v252 = vld [vmem:[%s207 + $0x64] sm:$0xf]
      %v253 = vld [vmem:[%s207 + $0x68] sm:$0xf]
      %v254 = vld [vmem:[%s207 + $0x6c] sm:$0xf]
      %v255 = vld [vmem:[%s207 + $0x70] sm:$0xf]
      %v256 = vld [vmem:[%s207 + $0x74] sm:$0xf]
      %v257 = vld [vmem:[%s207 + $0x78] sm:$0xf]
      %v258 = vld [vmem:[%s207 + $0x7c] sm:$0xf]
      %v291 = vunpack.c.l.b16 %v227
      %v292 = vunpack.c.l.b16 %v228
      %v293 = vunpack.c.l.b16 %v229
      %v294 = vunpack.c.l.b16 %v230
      %v295 = vunpack.c.l.b16 %v231
      %v296 = vunpack.c.l.b16 %v232
      %v297 = vunpack.c.l.b16 %v233
      %v298 = vunpack.c.l.b16 %v234
      %v299 = vunpack.c.l.b16 %v235
      %v300 = vunpack.c.l.b16 %v236
      %v301 = vunpack.c.l.b16 %v237
      %v302 = vunpack.c.l.b16 %v238
      %v303 = vunpack.c.l.b16 %v239
      %v304 = vunpack.c.l.b16 %v240
      %v305 = vunpack.c.l.b16 %v241
      %v306 = vunpack.c.l.b16 %v242
      %v307 = vunpack.c.l.b16 %v243
      %v308 = vunpack.c.l.b16 %v244
      %v309 = vunpack.c.l.b16 %v245
      %v310 = vunpack.c.l.b16 %v246
      %v311 = vunpack.c.l.b16 %v247
      %v312 = vunpack.c.l.b16 %v248
      %v313 = vunpack.c.l.b16 %v249
      %v314 = vunpack.c.l.b16 %v250
      %v315 = vunpack.c.l.b16 %v251
      %v316 = vunpack.c.l.b16 %v252
      %v317 = vunpack.c.l.b16 %v253
      %v318 = vunpack.c.l.b16 %v254
      %v319 = vunpack.c.l.b16 %v255
      %v320 = vunpack.c.l.b16 %v256
      %v321 = vunpack.c.l.b16 %v257
      %v322 = vunpack.c.l.b16 %v258
      %v323 = vpack.c.b16 %v292, %v291
      %v324 = vpack.c.b16 %v294, %v293
      %v325 = vpack.c.b16 %v296, %v295
      %v326 = vpack.c.b16 %v298, %v297
      %v327 = vpack.c.b16 %v300, %v299
      %v328 = vpack.c.b16 %v302, %v301
      %v329 = vpack.c.b16 %v304, %v303
      %v330 = vpack.c.b16 %v306, %v305
      %v331 = vpack.c.b16 %v308, %v307
      %v332 = vpack.c.b16 %v310, %v309
      %v333 = vpack.c.b16 %v312, %v311
      %v334 = vpack.c.b16 %v314, %v313
      %v335 = vpack.c.b16 %v316, %v315
      %v336 = vpack.c.b16 %v318, %v317
      %v337 = vpack.c.b16 %v320, %v319
      %v338 = vpack.c.b16 %v322, %v321
      %vm339 = vcmask 261120
      %v341 = vsel %vm339, %v226, 0
      %v344 = vsel %vm339, %v323, 0
      %v347 = vsel %vm339, %v324, 0
      %v350 = vsel %vm339, %v325, 0
      %v353 = vsel %vm339, %v326, 0
      %v356 = vsel %vm339, %v327, 0
      %v359 = vsel %vm339, %v328, 0
      %v362 = vsel %vm339, %v329, 0
      %v365 = vsel %vm339, %v330, 0
      %v368 = vsel %vm339, %v331, 0
      %v371 = vsel %vm339, %v332, 0
      %v374 = vsel %vm339, %v333, 0
      %v377 = vsel %vm339, %v334, 0
      %v380 = vsel %vm339, %v335, 0
      %v383 = vsel %vm339, %v336, 0
      %v386 = vsel %vm339, %v337, 0
      %v389 = vsel %vm339, %v338, 0
      %391 = vmatprep.subr.bf16.mxu0 0
      %392 = vmatpush1.bf16.xpose.msra.mxu0 %v344
      %393 = vmatprep.subr.bf16.mxu0 0
      %394 = vmatpush1.bf16.xpose.msra.mxu0 %v347
      %395 = vmatprep.subr.bf16.mxu0 0
      %396 = vmatpush1.bf16.xpose.msra.mxu0 %v350
      %397 = vmatprep.subr.bf16.mxu0 0
      %398 = vmatpush1.bf16.xpose.msra.mxu0 %v353
      %399 = vmatprep.subr.bf16.mxu0 0
      %400 = vmatpush1.bf16.xpose.msra.mxu0 %v356
      %401 = vmatprep.subr.bf16.mxu0 0
      %402 = vmatpush1.bf16.xpose.msra.mxu0 %v359
      %403 = vmatprep.subr.bf16.mxu0 0
      %404 = vmatpush1.bf16.xpose.msra.mxu0 %v362
      %405 = vmatprep.subr.bf16.mxu0 0
      %406 = vmatpush1.bf16.xpose.msra.mxu0 %v365
      %407 = vmatprep.subr.bf16.mxu0 0
      %408 = vmatpush1.bf16.xpose.msra.mxu0 %v368
      %409 = vmatprep.subr.bf16.mxu0 0
      %410 = vmatpush1.bf16.xpose.msra.mxu0 %v371
      %411 = vmatprep.subr.bf16.mxu0 0
      %412 = vmatpush1.bf16.xpose.msra.mxu0 %v374
      %413 = vmatprep.subr.bf16.mxu0 0
      %414 = vmatpush1.bf16.xpose.msra.mxu0 %v377
      %415 = vmatprep.subr.bf16.mxu0 0
      %416 = vmatpush1.bf16.xpose.msra.mxu0 %v380
      %417 = vmatprep.subr.bf16.mxu0 0
      %418 = vmatpush1.bf16.xpose.msra.mxu0 %v383
      %419 = vmatprep.subr.bf16.mxu0 0
      %420 = vmatpush1.bf16.xpose.msra.mxu0 %v386
      %421 = vmatprep.subr.bf16.mxu0 0
      %422 = vmatpush1.bf16.xpose.msra.mxu0 %v389
      %423 = vmatprep.mubr.bf16.mxu0 0
      %424 = vmatmul.mubr.bf16.gmra.mrb[0].mxu0 %v341
      %v425 = vpop.f32.mrb[0].mxu0
      %v426 = vadd.f32 0.0, %v425
      %v427 = vpop.f32.mrb[0].mxu0
      %v428 = vadd.f32 0.0, %v427
      %v429 = vpop.f32.mrb[0].mxu0
      %v430 = vpop.f32.mrb[0].mxu0
      %431 = vdwg.mxu0
      %v432 = vlaneseq
      %v433 = vand.u32 %v432, 127
      %v434 = vadd.s32 %v433, 128
      %v435 = vld [vmem:[%s212] sm:$0xff]
      %s436 = smul.u32 %s19, 256
      %v437 = vstv %s436
      %v438 = vsub.s32 %v435, %v437
      %439 = vset.pattern.permute.xlu0 0
      %440 = vperm.xlu0 %439, %v438
      %v441 = vpop.permute.xlu0 %440
      %vm442 = vcmp.eq.s32.totalorder %v433, %v441
      %vm443 = vcmp.eq.s32.totalorder %v434, %v441
      %v444 = vld [vmem:[#allocation4] sm:$0xff]
      %v445 = vsel %vm442, %v426, 0.0
      %v446 = vsel %vm443, %v428, 0.0
      %v447 = vadd.f32 %v445, %v446
      %448 = vadd.xlane.f32.xlu0 %v447
      %v449 = vpop.xlane.xlu0 %448
      %v450 = vadd.f32 %v444, %v449
      %vm451 = vcmask 7168
      %452 = vst.msk [vmem:[#allocation4] sm:$0xff] %vm451, %v450
      %v453 = vld [vmem:[#allocation2] sm:$0xff]
      %v454 = vmax.f32 %v426, %v428
      %455 = vmax.xlane.f32.xlu0 %v454
      %v456 = vpop.xlane.xlu0 %455
      %v457 = vmax.f32 %v453, %v456
      %v458 = vld [vmem:[#allocation3] sm:$0xff]
      %v459 = vsub.f32 %v453, %v457
      %v460 = vmul.f32 %v459, 1.442695
      %v461 = vpow.pop %v460
      %v462 = vmul.f32 %v458, %v461
      %464 = vset.pattern.permute.xlu0 0
      %465 = vperm.xlu0 %464, %v457
      %v466 = vpop.permute.xlu0 %465
      %v468 = vsub.f32 %v426, %v466
      %v469 = vsub.f32 %v428, %v466
      %v470 = vmul.f32 %v468, 1.442695
      %v471 = vpow.pop %v470
      %v472 = vmul.f32 %v469, 1.442695
      %v473 = vpow.pop %v472
      %v474 = vadd.f32 %v471, %v473
      %475 = vadd.xlane.f32.xlu0 %v474
      %v476 = vpop.xlane.xlu0 %475
      %v477 = vadd.f32 %v462, %v476
      %478 = vst.msk [vmem:[#allocation3] sm:$0xff] %vm451, %v477
      %479 = vst.msk [vmem:[#allocation2] sm:$0xff] %vm451, %v457
      // Predicated region
      $region37: #{tpu_custom_call.1} parent=31 // pred_check
        %p480 = pneg %p218
      $region38: #{tpu_custom_call.1} parent=31 // pred_check_branch
        %482 = sbr.rel (%p480) target = $region40
      $region39: #{tpu_custom_call.1} parent=31 // pred_region
        %v483 = vld [vmem:[#allocation2] sm:$0xff]
        %v484 = vld [vmem:[#allocation3] sm:$0xff]
        %v485 = vlog2.pop %v484
        %v486 = vmul.f32 %v485, 0.6931472
        %v487 = vadd.f32 %v483, %v486
        %v488 = vld [vmem:[%s212] sm:$0xff]
        %vm489 = vcmp.ne.s32.totalorder %v488, 4294967196
        %v490 = vld [vmem:[#allocation4] sm:$0xff]
        %v491 = vsub.f32 %v487, %v490
        %v492 = vsel %vm489, %v491, 0.0
        %493 = vst.msk [vmem:[%s216] sm:$0xff] %vm451, %v492
      $region40: #{tpu_custom_call.1} parent=31 // pred_fallthru
        _
      %p494 = scmp.lt.s32.totalorder %s18, 1
      %s495 = scalar_select %p494, %s18, 1
      %s496 = smul.addr %s495, 8
      %s497 = scalar_lea.vmem %s3, %s496
      // Predicated region
      $region41: #{tpu_custom_call.1} parent=31 // pred_check
        %p498 = pneg %p122
      $region42: #{tpu_custom_call.1} parent=31 // pred_check_branch
        %500 = sbr.rel (%p498) target = $region44
      $region43: #{tpu_custom_call.1} parent=31 // pred_region
        _
      $region44: #{tpu_custom_call.1} parent=31 // pred_fallthru
        _
    $region32: #{tpu_custom_call.1} parent=5 // pred_fallthru
      _
    %p501 = scmp.le.s32.totalorder 2, %s9
    // Predicated region
    $region45: #{tpu_custom_call.1} parent=5 // pred_check
      %p502 = pneg %p501
    $region46: #{tpu_custom_call.1} parent=5 // pred_check_branch
      %504 = sbr.rel (%p502) target = $region48
    $region47: #{tpu_custom_call.1} parent=5 // pred_region
      %s505 = ssub.s32 %s9, 2
      // Predicated region
      $region49: #{tpu_custom_call.1} parent=47 // pred_check
        %p506 = pneg %p128
      $region50: #{tpu_custom_call.1} parent=47 // pred_check_branch
        %508 = sbr.rel (%p506) target = $region52
      $region51: #{tpu_custom_call.1} parent=47 // pred_region
        %p509 = scmp.lt.s32.totalorder %s20, 1
        %s510 = scalar_select %p509, %s20, 1
        %s511 = smul.addr %s510, 8
        %s512 = scalar_lea.vmem %s3, %s511
      $region52: #{tpu_custom_call.1} parent=47 // pred_fallthru
        _
    $region48: #{tpu_custom_call.1} parent=5 // pred_fallthru
      _
  $region6: #{tpu_custom_call.1} parent=0 // loop_footer
    %s13 = sadd.s32 1, %s9
  $region7: #{tpu_custom_call.1} parent=0 // loop_footer_branch
    %8 = sbr.rel target = $region3
  $region8: #{tpu_custom_call.1} parent=0 // loop_exit
    _

</llo_original>
